<compile_context>
chip_gen: v5e
topology: v5e:2x2
jax: 0.10.0
libtpu: 0.0.40
codegen_flags: <defaults>
</compile_context>

<pallas_src>
import functools

import jax
import jax.numpy as jnp
from jax.experimental import pallas as pl
from jax.experimental.pallas import tpu as pltpu


# ----------------------------- Pallas kernels ------------------------------

def _pool_conv_sigmoid_kernel(w_ref, x_ref, att_ref, slab_ref, *, inv_hw,
                              slab_lanes):
    # w:    (3,) f32 SMEM            -- Conv1d(1,1,3,padding=1,bias=False) taps
    # x:    (1, C, ts) VMEM          -- lane-dense flattened-spatial tile
    # att:  (1, C, 1)                -- written once, on the last tile
    # slab: (C, slab_lanes) f32 VMEM -- lane-resident partial-sum accumulator
    C = slab_ref.shape[0]
    ts = x_ref.shape[-1]
    n_chunks = ts // slab_lanes
    t = pl.program_id(1)

    @pl.when(t == 0)
    def _():
        slab_ref[...] = jnp.zeros_like(slab_ref)

    # Aligned, lane-dense VPU adds only; cross-lane reduction is deferred.
    part = x_ref[0, :, 0:slab_lanes].astype(jnp.float32)
    for j in range(1, n_chunks):
        part = part + x_ref[0, :, j * slab_lanes:(j + 1) * slab_lanes].astype(
            jnp.float32)
    slab_ref[...] = slab_ref[...] + part

    @pl.when(t == pl.num_programs(1) - 1)
    def _():
        # Single XLU lane-reduce -> per-channel mean, shape (C, 1).
        m = jnp.sum(slab_ref[...], axis=-1, keepdims=True) * inv_hw
        w0 = w_ref[0]
        w1 = w_ref[1]
        w2 = w_ref[2]
        # out[c] = w0*m[c-1] + w1*m[c] + w2*m[c+1] with zero padding at the
        # edges: cyclic sublane rolls, wrapped rows masked to zero.
        up = pltpu.roll(m, shift=1, axis=0)        # up[c] = m[c-1]; up[0] wraps
        dn = pltpu.roll(m, shift=C - 1, axis=0)    # dn[c] = m[c+1]; dn[C-1] wraps
        row = jax.lax.broadcasted_iota(jnp.int32, (C, 1), 0)
        up = jnp.where(row == 0, 0.0, up)
        dn = jnp.where(row == C - 1, 0.0, dn)
        z = w0 * up + w1 * m + w2 * dn
        att_ref[0] = jax.nn.sigmoid(z)


def _expand_kernel(att_ref, o_ref):
    # att: (1, C, 1) -> o: (1, C, ts); y.expand_as(x) on the flattened layout.
    o_ref[...] = jnp.broadcast_to(att_ref[...], o_ref.shape).astype(o_ref.dtype)


# ------------------------------- wrapper ------------------------------------

def _pick_spatial_tile(S, C, itemsize, budget=4 << 20):
    """Largest multiple of 128 that divides S and keeps one (1, C, ts) block
    under ~4 MiB (two double-buffered blocks fit v5e's 16 MiB scoped VMEM)."""
    if S % 128 != 0:
        return S                  # full-extent block; lane-multiple rule waived
    max_lanes = max(128, budget // max(1, itemsize * C))
    best = 128
    ts = 128
    while ts <= S and ts <= max_lanes:
        if S % ts == 0:
            best = ts
        ts += 128
    return best


def channel_attention(x, w3, *, spatial_tile=None):
    """x: (B, C, H, W); w3: (3,) Conv1d weight.  Returns the sigmoid attention
    broadcast to x's shape (matches ChannelAttention.forward)."""
    B, C, H, W = x.shape
    S = H * W
    ts = (_pick_spatial_tile(S, C, x.dtype.itemsize)
          if spatial_tile is None else spatial_tile)
    assert S % ts == 0 and (ts % 128 == 0 or ts == S), (S, ts)
    n_t = S // ts
    slab_lanes = 128 if ts % 128 == 0 else ts

    x3 = x.reshape(B, C, S)
    w3 = jnp.asarray(w3, jnp.float32).reshape(3)

    pool_kernel = functools.partial(
        _pool_conv_sigmoid_kernel, inv_hw=1.0 / float(S), slab_lanes=slab_lanes)
    att = pl.pallas_call(
        pool_kernel,
        out_shape=jax.ShapeDtypeStruct((B, C, 1), jnp.float32),
        grid=(B, n_t),
        in_specs=[
            pl.BlockSpec(memory_space=pltpu.MemorySpace.SMEM),     # conv taps
            pl.BlockSpec((1, C, ts), lambda b, t: (b, 0, t)),      # x tile
        ],
        out_specs=pl.BlockSpec((1, C, 1), lambda b, t: (b, 0, 0)),
        scratch_shapes=[pltpu.VMEM((C, slab_lanes), jnp.float32)],
        compiler_params=pltpu.CompilerParams(
            dimension_semantics=("parallel", "arbitrary")),
    )(w3, x3)

    out3 = pl.pallas_call(
        _expand_kernel,
        out_shape=jax.ShapeDtypeStruct((B, C, S), x.dtype),
        grid=(B, n_t),
        in_specs=[pl.BlockSpec((1, C, 1), lambda b, t: (b, 0, 0))],
        out_specs=pl.BlockSpec((1, C, ts), lambda b, t: (b, 0, t)),
        compiler_params=pltpu.CompilerParams(
            dimension_semantics=("parallel", "parallel")),
    )(att)
    # TODO(synk): callers that immediately multiply by x should consume `att`
    # directly and fuse the broadcast into that op (halves total HBM traffic).
    return out3.reshape(B, C, H, W)


# ----------------------------- pure-JAX reference ----------------------------

def channel_attention_ref(x, w3):
    y = jnp.mean(x.astype(jnp.float32), axis=(2, 3))          # (B, C)
    yp = jnp.pad(y, ((0, 0), (1, 1)))                         # Conv1d zero pad
    z = w3[0] * yp[:, :-2] + w3[1] * yp[:, 1:-1] + w3[2] * yp[:, 2:]
    att = jax.nn.sigmoid(z)
    return jnp.broadcast_to(att[:, :, None, None], x.shape).astype(x.dtype)


# ---------------------------------- main -------------------------------------

if __name__ == "__main__":
    B, C, H, W = 2, 8, 16, 16
    key = jax.random.PRNGKey(0)
    kx, kw = jax.random.split(key)
    x = jax.random.normal(kx, (B, C, H, W), jnp.float32)
    w3 = 0.5 * jax.random.normal(kw, (3,), jnp.float32)   # Conv1d(1,1,3) weight

    # spatial_tile=128 -> 2 lane-dense tiles per image: exercises the tiled
    # accumulation path as well as the final conv+sigmoid finalize step.
    out = channel_attention(x, w3, spatial_tile=128)
    jax.block_until_ready(out)

    ref = channel_attention_ref(x, w3)
    assert out.shape == (B, C, H, W), out.shape
    max_err = float(jnp.max(jnp.abs(out - ref)))
    assert max_err < 1e-5, max_err
    print("KERNEL_OK")
</pallas_src>

<mosaic_0001>
module attributes {stable_mosaic.version = 11 : i64} {
  func.func @_pool_conv_sigmoid_kernel(%arg0: i32, %arg1: i32, %arg2: memref<3xf32, #tpu.memory_space<smem>>, %arg3: memref<1x8x128xf32, #tpu.memory_space<vmem>>, %arg4: memref<1x8x1xf32, #tpu.memory_space<vmem>>, %arg5: memref<8x128xf32, #tpu.memory_space<vmem>>) attributes {dimension_semantics = [#tpu.dimension_semantics<parallel>, #tpu.dimension_semantics<arbitrary>], iteration_bounds = array<i64: 2, 2>, scalar_prefetch = 0 : i64, scratch_operands = 1 : i64, tpu.core_type = #tpu.core_type<tc>, window_params = [{transform_indices = @transform_0, window_bounds = array<i64: 3>}, {transform_indices = @transform_1, window_bounds = array<i64: 1, 8, 128>}, {transform_indices = @transform_2, window_bounds = array<i64: 1, 8, 1>}]} {
    %c0_i32 = arith.constant 0 : i32
    %0 = arith.cmpi eq, %arg1, %c0_i32 : i32
    %1 = arith.extui %0 : i1 to i32
    %c0_i32_0 = arith.constant 0 : i32
    %2 = arith.cmpi ne, %1, %c0_i32_0 : i32
    scf.if %2 {
      %cst = arith.constant 0.000000e+00 : f32
      %11 = vector.broadcast %cst : f32 to vector<8x128xf32>
      %c0_8 = arith.constant 0 : index
      %c0_9 = arith.constant 0 : index
      %12 = vector.load %arg5[%c0_8, %c0_9] : memref<8x128xf32, #tpu.memory_space<vmem>>, vector<8x128xf32>
      tpu.vector_store %arg5[%c0_8, %c0_9], %11 {strides = array<i32>} : memref<8x128xf32, #tpu.memory_space<vmem>>, vector<8x128xf32>,
    } else {
    }
    %c0 = arith.constant 0 : index
    %c0_1 = arith.constant 0 : index
    %c0_2 = arith.constant 0 : index
    %3 = vector.load %arg3[%c0, %c0_1, %c0_2] : memref<1x8x128xf32, #tpu.memory_space<vmem>>, vector<1x8x128xf32>
    %4 = vector.shape_cast %3 : vector<1x8x128xf32> to vector<8x128xf32>
    %c0_3 = arith.constant 0 : index
    %c0_4 = arith.constant 0 : index
    %5 = vector.load %arg5[%c0_3, %c0_4] : memref<8x128xf32, #tpu.memory_space<vmem>>, vector<8x128xf32>
    %6 = arith.addf %5, %4 : vector<8x128xf32>
    %c0_5 = arith.constant 0 : index
    %c0_6 = arith.constant 0 : index
    %7 = vector.load %arg5[%c0_5, %c0_6] : memref<8x128xf32, #tpu.memory_space<vmem>>, vector<8x128xf32>
    tpu.vector_store %arg5[%c0_5, %c0_6], %6 {strides = array<i32>} : memref<8x128xf32, #tpu.memory_space<vmem>>, vector<8x128xf32>,
    %c1_i32 = arith.constant 1 : i32
    %8 = arith.cmpi eq, %arg1, %c1_i32 : i32
    %9 = arith.extui %8 : i1 to i32
    %c0_i32_7 = arith.constant 0 : i32
    %10 = arith.cmpi ne, %9, %c0_i32_7 : i32
    scf.if %10 {
      %c0_8 = arith.constant 0 : index
      %c0_9 = arith.constant 0 : index
      %11 = vector.load %arg5[%c0_8, %c0_9] : memref<8x128xf32, #tpu.memory_space<vmem>>, vector<8x128xf32>
      %cst = arith.constant dense<0.000000e+00> : vector<8xf32>
      %12 = vector.multi_reduction <add>, %11, %cst [1] : vector<8x128xf32> to vector<8xf32>
      %13 = vector.shape_cast %12 : vector<8xf32> to vector<8x1xf32>
      %cst_10 = arith.constant 3.906250e-03 : f32
      %14 = vector.broadcast %cst_10 : f32 to vector<8x1xf32>
      %15 = arith.mulf %13, %14 : vector<8x1xf32>
      %c0_11 = arith.constant 0 : index
      %16 = memref.load %arg2[%c0_11] : memref<3xf32, #tpu.memory_space<smem>>
      %c1 = arith.constant 1 : index
      %17 = memref.load %arg2[%c1] : memref<3xf32, #tpu.memory_space<smem>>
      %c2 = arith.constant 2 : index
      %18 = memref.load %arg2[%c2] : memref<3xf32, #tpu.memory_space<smem>>
      %c1_i32_12 = arith.constant 1 : i32
      %19 = tpu.dynamic_rotate %15 by %c1_i32_12 dim 0 : vector<8x1xf32>, i32 -> vector<8x1xf32>
      %c7_i32 = arith.constant 7 : i32
      %20 = tpu.dynamic_rotate %15 by %c7_i32 dim 0 : vector<8x1xf32>, i32 -> vector<8x1xf32>
      %21 = tpu.iota {dimensions = array<i32: 0>} : vector<8x1xi32>
      %c0_i32_13 = arith.constant 0 : i32
      %22 = vector.broadcast %c0_i32_13 : i32 to vector<8x1xi32>
      %23 = arith.cmpi eq, %21, %22 : vector<8x1xi32>
      %cst_14 = arith.constant 0.000000e+00 : f32
      %24 = vector.broadcast %cst_14 : f32 to vector<8x1xf32>
      %25 = arith.select %23, %24, %19 : vector<8x1xi1>, vector<8x1xf32>
      %c7_i32_15 = arith.constant 7 : i32
      %26 = vector.broadcast %c7_i32_15 : i32 to vector<8x1xi32>
      %27 = arith.cmpi eq, %21, %26 : vector<8x1xi32>
      %cst_16 = arith.constant 0.000000e+00 : f32
      %28 = vector.broadcast %cst_16 : f32 to vector<8x1xf32>
      %29 = arith.select %27, %28, %20 : vector<8x1xi1>, vector<8x1xf32>
      %30 = vector.broadcast %16 : f32 to vector<8x1xf32>
      %31 = arith.mulf %30, %25 : vector<8x1xf32>
      %32 = vector.broadcast %17 : f32 to vector<8x1xf32>
      %33 = arith.mulf %32, %15 : vector<8x1xf32>
      %34 = arith.addf %31, %33 : vector<8x1xf32>
      %35 = vector.broadcast %18 : f32 to vector<8x1xf32>
      %36 = arith.mulf %35, %29 : vector<8x1xf32>
      %37 = arith.addf %34, %36 : vector<8x1xf32>
      %38 = arith.negf %37 : vector<8x1xf32>
      %39 = math.exp %38 : vector<8x1xf32>
      %cst_17 = arith.constant 1.000000e+00 : f32
      %40 = vector.broadcast %cst_17 : f32 to vector<8x1xf32>
      %41 = arith.addf %40, %39 : vector<8x1xf32>
      %42 = arith.divf %40, %41 : vector<8x1xf32>
      %c0_18 = arith.constant 0 : index
      %c0_19 = arith.constant 0 : index
      %c0_20 = arith.constant 0 : index
      %43 = vector.load %arg4[%c0_18, %c0_19, %c0_20] : memref<1x8x1xf32, #tpu.memory_space<vmem>>, vector<1x8x1xf32>
      %44 = vector.shape_cast %43 : vector<1x8x1xf32> to vector<8x1xf32>
      %45 = vector.shape_cast %42 : vector<8x1xf32> to vector<1x8x1xf32>
      tpu.vector_store %arg4[%c0_18, %c0_19, %c0_20], %45 {strides = array<i32>} : memref<1x8x1xf32, #tpu.memory_space<vmem>>, vector<1x8x1xf32>,
    } else {
    }
    return
  }
  func.func @transform_0(%arg0: i32, %arg1: i32) -> i32 {
    %c0_i32 = arith.constant 0 : i32
    %c0_i32_0 = arith.constant 0 : i32
    return %c0_i32 : i32
  }
  func.func @transform_1(%arg0: i32, %arg1: i32) -> (i32, i32, i32) {
    %c0_i32 = arith.constant 0 : i32
    %c0_i32_0 = arith.constant 0 : i32
    return %arg0, %c0_i32, %arg1 : i32, i32, i32
  }
  func.func @transform_2(%arg0: i32, %arg1: i32) -> (i32, i32, i32) {
    %c0_i32 = arith.constant 0 : i32
    %c0_i32_0 = arith.constant 0 : i32
    %c0_i32_1 = arith.constant 0 : i32
    return %arg0, %c0_i32, %c0_i32_0 : i32, i32, i32
  }
}

</mosaic_0001>

<llo_original>
// kernel: tpu_custom_call.1
$region0: #{tpu_custom_call.1}
  #allocation0 [shape = 'u32[]', space=smem, size = 0x4, offset = 0x4, fixed_abs, tag = 'smem constant byte address 0x4 - core index']
  #allocation1 [shape = 'u32[72,128]{1,0:T(1,128)}', space=vmem, size = 0x9000, scoped, tag = 'internal scratch']
  #allocation2 [shape = 'f32[8,128]{1,0:T(8,128)}', space=vmem, size = 0x1000, scoped, tag = 'scratch operand']
  %s0 = inlined_call_operand.hbm [shape: f32[3], index: 0, kind: input, shape index: {}]
  %s1 = inlined_call_operand.hbm [shape: f32[2,8,256], index: 1, kind: input, shape index: {}]
  %s2 = inlined_call_operand.vmem [shape: f32[2,8,1], index: 2, kind: output, shape index: {}]
  %s3 = sld [smem:[#allocation0]]
  $region57: #{tpu_custom_call.1} parent=0
    _
  %s5 = ssub.s32 1, %s3
  %s6 = scalar_select 0, %s5, %s3
  $region1: #{tpu_custom_call.1} parent=0
    #allocation3 [shape = 'u8[512]{0}', space=smem, size = 0x200, scoped, tag = 'input window, operand 0, single buffered']
    #allocation4 [shape = 's32[2]{0}', space=sflag, size = 0x8, scoped, tag = 'scoped memory for tpu_custom_call.1']
    #allocation5 [shape = 's32[2]{0}', space=sflag, size = 0x8, scoped, tag = 'scoped memory for tpu_custom_call.1']
    #allocation6 [shape = 'u8[8192]{0}', space=vmem, size = 0x2000, scoped, tag = 'input window, operand 1']
    %7 = vsyncpa [#allocation5], 0
    %8 = vsyncpa [#allocation4], 0
    %s9 = scalar_lea.sflag [#allocation4], 1
    %10 = vsyncpa %s9, 0
    loop: start=0, step=1, limit=6
    $region2: #{tpu_custom_call.1} parent=1 // loop_pre_header
      _
    $region3: #{tpu_custom_call.1} parent=1 // loop_header
      %s12 = sphi 0, %s16
      %p13 = scmp.ge.s32.totalorder %s12, 6
      %s19 = sphi 0, %s31
      %s20 = sphi 0, %s27
      %s21 = sphi 0, %s19
      %s22 = sphi 0, %s20
      %s23 = sphi 0, %s21
      %s24 = sphi 0, %s22
      %s32 = sphi 0, %s32
      %s34 = sphi 0, %s32
      %s35 = sphi 0, %s34
      %s49 = sphi 0, %s35
      %s57 = sphi 0, %s59
      %s60 = sphi 0, %s57
      %s61 = sphi 0, %s60
      %s77 = sphi 0, %s61
      %s83 = sphi 0, %s85
      %s86 = sphi 0, %s83
      %s87 = sphi 0, %s86
      %s103 = sphi 0, %s87
    $region4: #{tpu_custom_call.1} parent=1 // loop_header_branch
      %15 = sbr.rel (%p13) target = $region8
    $region5: #{tpu_custom_call.1} parent=1 // loop_body
      %s17 = ssub.s32 %s12, 1
      %s18 = ssub.s32 %s12, 2
      %s25 = sadd.s32 1, %s20
      %p26 = scmp.ge.s32.totalorder %s25, 2
      %s27 = scalar_select %p26, 0, %s25
      %s28 = sadd.s32 1, %s19
      %s29 = scalar_select %p26, %s28, %s19
      %p30 = scmp.ge.s32.totalorder %s29, 2
      %s31 = scalar_select %p30, 0, %s29
      %s33 = sadd.s32 %s32, 1
      %p36 = scmp.eq.s32.totalorder %s12, 3
      %p37 = scmp.ne.s32.totalorder %s32, %s34
      %p38 = scmp.eq.s32.totalorder %s12, 0
      %p39 = por %p37, %p38
      %p40 = scmp.ne.s32.totalorder %s32, %s34
      %p41 = scmp.eq.s32.totalorder %s17, 3
      %p42 = por %p40, %p41
      %p43 = scmp.ne.s32.totalorder %s34, %s35
      %p44 = scmp.eq.s32.totalorder %s17, 0
      %p45 = por %p43, %p44
      %p46 = scmp.ne.s32.totalorder %s34, %s35
      %p47 = scmp.eq.s32.totalorder %s18, 3
      %p48 = por %p46, %p47
      %p50 = scmp.ne.s32.totalorder %s35, %s49
      %p51 = scmp.eq.s32.totalorder %s18, 0
      %p52 = por %p50, %p51
      %s53 = ssub.s32 %s19, %s31
      %s54 = ssub.s32 %s20, %s27
      %s55 = sor.u32 %s53, %s54
      %p56 = scmp.eq.s32.totalorder %s55, 0
      %s58 = sadd.s32 %s57, 1
      %s59 = scalar_select %p56, %s57, %s58
      %p62 = pneg %p56
      %p63 = scmp.eq.s32.totalorder %s12, 3
      %p64 = por %p62, %p63
      %p65 = scmp.ne.s32.totalorder %s57, %s60
      %p66 = scmp.eq.s32.totalorder %s12, 0
      %p67 = por %p65, %p66
      %p68 = scmp.ne.s32.totalorder %s57, %s60
      %p69 = scmp.eq.s32.totalorder %s17, 3
      %p70 = por %p68, %p69
      %p71 = scmp.ne.s32.totalorder %s60, %s61
      %p72 = scmp.eq.s32.totalorder %s17, 0
      %p73 = por %p71, %p72
      %p74 = scmp.ne.s32.totalorder %s60, %s61
      %p75 = scmp.eq.s32.totalorder %s18, 3
      %p76 = por %p74, %p75
      %p78 = scmp.ne.s32.totalorder %s61, %s77
      %p79 = scmp.eq.s32.totalorder %s18, 0
      %p80 = por %p78, %p79
      %s81 = ssub.s32 %s19, %s31
      %p82 = scmp.eq.s32.totalorder %s81, 0
      %s84 = sadd.s32 %s83, 1
      %s85 = scalar_select %p82, %s83, %s84
      %p88 = pneg %p82
      %p89 = scmp.eq.s32.totalorder %s12, 3
      %p90 = por %p88, %p89
      %p91 = scmp.ne.s32.totalorder %s83, %s86
      %p92 = scmp.eq.s32.totalorder %s12, 0
      %p93 = por %p91, %p92
      %p94 = scmp.ne.s32.totalorder %s83, %s86
      %p95 = scmp.eq.s32.totalorder %s17, 3
      %p96 = por %p94, %p95
      %p97 = scmp.ne.s32.totalorder %s86, %s87
      %p98 = scmp.eq.s32.totalorder %s17, 0
      %p99 = por %p97, %p98
      %p100 = scmp.ne.s32.totalorder %s86, %s87
      %p101 = scmp.eq.s32.totalorder %s18, 3
      %p102 = por %p100, %p101
      %p104 = scmp.ne.s32.totalorder %s87, %s103
      %p105 = scmp.eq.s32.totalorder %s18, 0
      %p106 = por %p104, %p105
      %p107 = scmp.le.s32.totalorder 1, %s12
      %p108 = scmp.lt.s32.totalorder %s12, 5
      %p109 = pnand %p107, %p108
      %p110 = pneg %p109
      // Predicated region
      $region9: #{tpu_custom_call.1} parent=5 // pred_check
        _
      $region10: #{tpu_custom_call.1} parent=5 // pred_check_branch
        %112 = sbr.rel (%p109) target = $region12
      $region11: #{tpu_custom_call.1} parent=5 // pred_region
        %s113 = ssub.s32 %s12, 1
        // Predicated region
        $region13: #{tpu_custom_call.1} parent=11 // pred_check
          %p114 = pneg %p45
        $region14: #{tpu_custom_call.1} parent=11 // pred_check_branch
          %116 = sbr.rel (%p114) target = $region16
        $region15: #{tpu_custom_call.1} parent=11 // pred_region
          %118 = vsyncadd [#allocation5], 0
          %s120 = sshll.u32 %s0, 4
          %s121 = int_to_ptr.hbm [resolvable:$true] %s120
          %123 = dma.hbm_to_smem %s121, 16, [#allocation3], [#allocation5]
        $region16: #{tpu_custom_call.1} parent=11 // pred_fallthru
          _
      $region12: #{tpu_custom_call.1} parent=5 // pred_fallthru
        _
      %p124 = scmp.lt.s32.totalorder %s12, 4
      // Predicated region
      $region17: #{tpu_custom_call.1} parent=5 // pred_check
        %p125 = pneg %p124
      $region18: #{tpu_custom_call.1} parent=5 // pred_check_branch
        %127 = sbr.rel (%p125) target = $region20
      $region19: #{tpu_custom_call.1} parent=5 // pred_region
        // Predicated region
        $region21: #{tpu_custom_call.1} parent=19 // pred_check
          %p128 = pneg %p67
        $region22: #{tpu_custom_call.1} parent=19 // pred_check_branch
          %130 = sbr.rel (%p128) target = $region24
        $region23: #{tpu_custom_call.1} parent=19 // pred_region
          %s131 = sand.u32 %s57, 1
          %s132 = scalar_lea.sflag [#allocation4], %s131
          %s133 = sand.u32 %s57, 1
          %s134 = smul.addr %s133, 8
          %s135 = scalar_lea.vmem [#allocation6], %s134
          %137 = vsyncadd %s132, 0
          %s138 = smul.addr %s19, 2
          %s139 = sadd.s32 %s20, %s138
          %s140 = smul.addr %s139, 8
          %s141 = scalar_lea.hbm %s1, %s140
          %s143 = sshll.u32 %s141, 4
          %s144 = int_to_ptr.hbm [resolvable:$true] %s143
          %s145 = sshll.u32 %s135, 4
          %s146 = int_to_ptr.vmem [resolvable:$true] %s145
          %148 = dma.hbm_to_vmem [thread:$0]  %s144, 128, %s146, %s132
        $region24: #{tpu_custom_call.1} parent=19 // pred_fallthru
          _
      $region20: #{tpu_custom_call.1} parent=5 // pred_fallthru
        _
      %p149 = scmp.le.s32.totalorder 1, %s12
      %p150 = scmp.lt.s32.totalorder %s12, 5
      %p151 = pnand %p149, %p150
      %p152 = pneg %p151
      // Predicated region
      $region25: #{tpu_custom_call.1} parent=5 // pred_check
        _
      $region26: #{tpu_custom_call.1} parent=5 // pred_check_branch
        %154 = sbr.rel (%p151) target = $region28
      $region27: #{tpu_custom_call.1} parent=5 // pred_region
        %s155 = ssub.s32 %s12, 1
        // Predicated region
        $region29: #{tpu_custom_call.1} parent=27 // pred_check
          %p156 = pneg %p45
        $region30: #{tpu_custom_call.1} parent=27 // pred_check_branch
          %158 = sbr.rel (%p156) target = $region32
        $region31: #{tpu_custom_call.1} parent=27 // pred_region
          %160 = dma.done [#allocation5], 16
        $region32: #{tpu_custom_call.1} parent=27 // pred_fallthru
          _
        %s161 = sand.u32 %s60, 1
        %s162 = scalar_lea.sflag [#allocation4], %s161
        %s163 = sand.u32 %s60, 1
        %s164 = smul.addr %s163, 8
        %s165 = scalar_lea.vmem [#allocation6], %s164
        // Predicated region
        $region33: #{tpu_custom_call.1} parent=27 // pred_check
          %p166 = pneg %p73
        $region34: #{tpu_custom_call.1} parent=27 // pred_check_branch
          %168 = sbr.rel (%p166) target = $region36
        $region35: #{tpu_custom_call.1} parent=27 // pred_region
          %170 = dma.done %s162, 128
        $region36: #{tpu_custom_call.1} parent=27 // pred_fallthru
          _
        %171 = sfence
        %p172 = pneg %p45
        %p173 = pneg %p42
        %s174 = sand.u32 %s60, 1
        %s175 = scalar_lea.sflag [#allocation4], %s174
        %s176 = sand.u32 %s60, 1
        %s177 = smul.addr %s176, 8
        %s178 = scalar_lea.vmem [#allocation6], %s177
        %p179 = pneg %p73
        %p180 = pneg %p70
        %p181 = pneg %p99
        %p182 = pneg %p96
        %p183 = scmp.lt.s32.totalorder %s21, 1
        %s184 = scalar_select %p183, %s21, 1
        %s185 = smul.addr %s184, 8
        %s186 = scalar_lea.vmem %s2, %s185
        %p187 = scmp.lt.s32.totalorder %s21, 1
        %s188 = scalar_select %p187, %s21, 1
        %s189 = smul.addr %s188, 8
        %s190 = scalar_lea.vmem %s2, %s189
        %p191 = scmp.eq.s32.totalorder %s22, 0
        // Predicated region
        $region37: #{tpu_custom_call.1} parent=27 // pred_check
          %p192 = pneg %p191
        $region38: #{tpu_custom_call.1} parent=27 // pred_check_branch
          %194 = sbr.rel (%p192) target = $region40
        $region39: #{tpu_custom_call.1} parent=27 // pred_region
          %195 = vst [vmem:[#allocation2] sm:$0xff] 0.0
        $region40: #{tpu_custom_call.1} parent=27 // pred_fallthru
          _
        %v196 = vld [vmem:[%s165] sm:$0xff]
        %v197 = vld [vmem:[#allocation2] sm:$0xff]
        %v198 = vadd.f32 %v197, %v196
        %199 = vst [vmem:[#allocation2] sm:$0xff] %v198
        %p200 = scmp.eq.s32.totalorder %s22, 1
        // Predicated region
        $region41: #{tpu_custom_call.1} parent=27 // pred_check
          %p201 = pneg %p200
        $region42: #{tpu_custom_call.1} parent=27 // pred_check_branch
          %203 = sbr.rel (%p201) target = $region44
        $region43: #{tpu_custom_call.1} parent=27 // pred_region
          %v204 = vld [vmem:[#allocation2] sm:$0xff]
          %205 = vadd.xlane.f32.xlu0 %v204
          %v206 = vpop.xlane.xlu0 %205
          %v207 = vmul.f32 %v206, 0.00390625
          %s208 = sld [smem:[#allocation3]]
          %s209 = sld [smem:[#allocation3 + $0x1]]
          %s210 = sld [smem:[#allocation3 + $0x2]]
          %v211 = vrot.slane %v207, 7
          %v212 = vrot.slane %v207, 1
          %v213 = vlaneseq
          %v214 = vshrl.u32 %v213, 7
          %vm215 = vcmp.eq.s32.totalorder %v214, 0
          %v216 = vsel %vm215, 0.0, %v211
          %vm217 = vcmp.eq.s32.totalorder %v214, 7
          %v218 = vsel %vm217, 0.0, %v212
          %v219 = vstv %s208
          %v220 = vmul.f32 %v219, %v216
          %v221 = vstv %s209
          %v222 = vmul.f32 %v221, %v207
          %v223 = vadd.f32 %v220, %v222
          %v224 = vstv %s210
          %v225 = vmul.f32 %v224, %v218
          %v226 = vadd.f32 %v223, %v225
          %v227 = vxor.u32 %v226, 2147483648
          %v228 = vmul.f32 %v227, 1.442695
          %v229 = vpow.pop %v228
          %v230 = vadd.f32 %v229, 1.0
          %v231 = vrcp.pop %v230
          %v232 = vmul.f32 %v230, %v231
          %v233 = vsub.f32 1.0, %v232
          %v234 = vmul.f32 %v231, %v233
          %v235 = vadd.f32 %v231, %v234
          %vm236 = vweird.f32 %v230
          %vm237 = vweird.f32 %v231
          %vm238 = vmor %vm236, %vm237
          %v239 = vsel %vm238, %v231, %v235
          %v240 = vand.u32 2147483647, %v230
          %vm241 = vcmp.eq.f32.partialorder %v240, 8.507059e+37
          %v242 = vand.u32 %v230, 2147483648
          %v243 = vor.u32 1.1754944e-38, %v242
          %v244 = vsel %vm241, %v243, %v239
          %v245 = vmul.f32 1.0, %v244
          %vm246 = vcmask 7168
          %247 = vst.msk [vmem:[%s190] sm:$0xff] %vm246, %v245
        $region44: #{tpu_custom_call.1} parent=27 // pred_fallthru
          _
        %p248 = scmp.lt.s32.totalorder %s21, 1
        %s249 = scalar_select %p248, %s21, 1
        %s250 = smul.addr %s249, 8
        %s251 = scalar_lea.vmem %s2, %s250
        // Predicated region
        $region45: #{tpu_custom_call.1} parent=27 // pred_check
          %p252 = pneg %p96
        $region46: #{tpu_custom_call.1} parent=27 // pred_check_branch
          %254 = sbr.rel (%p252) target = $region48
        $region47: #{tpu_custom_call.1} parent=27 // pred_region
          _
        $region48: #{tpu_custom_call.1} parent=27 // pred_fallthru
          _
      $region28: #{tpu_custom_call.1} parent=5 // pred_fallthru
        _
      %p255 = scmp.le.s32.totalorder 2, %s12
      // Predicated region
      $region49: #{tpu_custom_call.1} parent=5 // pred_check
        %p256 = pneg %p255
      $region50: #{tpu_custom_call.1} parent=5 // pred_check_branch
        %258 = sbr.rel (%p256) target = $region52
      $region51: #{tpu_custom_call.1} parent=5 // pred_region
        %s259 = ssub.s32 %s12, 2
        // Predicated region
        $region53: #{tpu_custom_call.1} parent=51 // pred_check
          %p260 = pneg %p102
        $region54: #{tpu_custom_call.1} parent=51 // pred_check_branch
          %262 = sbr.rel (%p260) target = $region56
        $region55: #{tpu_custom_call.1} parent=51 // pred_region
          %p263 = scmp.lt.s32.totalorder %s23, 1
          %s264 = scalar_select %p263, %s23, 1
          %s265 = smul.addr %s264, 8
          %s266 = scalar_lea.vmem %s2, %s265
        $region56: #{tpu_custom_call.1} parent=51 // pred_fallthru
          _
      $region52: #{tpu_custom_call.1} parent=5 // pred_fallthru
        _
    $region6: #{tpu_custom_call.1} parent=1 // loop_footer
      %s16 = sadd.s32 1, %s12
    $region7: #{tpu_custom_call.1} parent=1 // loop_footer_branch
      %11 = sbr.rel target = $region3
    $region8: #{tpu_custom_call.1} parent=1 // loop_exit
      _
    %267 = vsyncpa [#allocation4], 1
    %s268 = scalar_lea.sflag [#allocation4], 1
    %269 = vsyncpa %s268, 1
    %270 = vsyncpa [#allocation5], 1
    %s271 = scalar_lea.sflag [#allocation5], 1
    %272 = vsyncpa %s271, 1

</llo_original>
